<compile_context>
chip_gen: v7x
topology: tpu7x:2x2x1
jax: 0.10.0
libtpu: 0.0.40
codegen_flags: <defaults>
</compile_context>

<pallas_src>
import jax
import jax.numpy as jnp
from jax import lax
from jax.experimental import pallas as pl
from jax.experimental.pallas import tpu as pltpu


# ---------------------------------------------------------------------------
# Kernels
# ---------------------------------------------------------------------------

def _linear_relu_kernel(x_ref, w_ref, o_ref):
    """Single-shot tile: o = relu(x @ w.T), f32 accumulation on the MXU.

    x_ref: (tm, K), w_ref: (n_blk, K) -> o_ref: (tm, n_blk). Contraction is
    along axis 1 of both operands, so the weight is consumed in its native
    (out_features, in_features) layout.
    """
    acc = lax.dot_general(
        x_ref[...], w_ref[...],
        dimension_numbers=(((1,), (1,)), ((), ())),
        preferred_element_type=jnp.float32,
    )
    o_ref[...] = jnp.maximum(acc, 0.0).astype(o_ref.dtype)


def _linear_relu_kernel_ksplit(x_ref, w_ref, o_ref, acc_ref):
    """K-split path: f32 VMEM accumulator, ReLU fused on the epilogue."""
    k = pl.program_id(2)

    @pl.when(k == 0)
    def _():
        acc_ref[...] = jnp.zeros_like(acc_ref)

    acc_ref[...] += lax.dot_general(
        x_ref[...], w_ref[...],
        dimension_numbers=(((1,), (1,)), ((), ())),
        preferred_element_type=jnp.float32,
    )

    @pl.when(k == pl.num_programs(2) - 1)
    def _():
        o_ref[...] = jnp.maximum(acc_ref[...], 0.0).astype(o_ref.dtype)


# ---------------------------------------------------------------------------
# Planning helpers
# ---------------------------------------------------------------------------

_TM_CAP = 2048
_TN_CAP = 1024


def _round_up(x: int, m: int) -> int:
    return ((x + m - 1) // m) * m


def _align_down(x: int, m: int) -> int:
    return (x // m) * m


def _sublane(dtype) -> int:
    """Sublane packing for the compute dtype: 8 (f32), 16 (bf16), 32 (int8/fp8)."""
    return max(8, 32 // jnp.dtype(dtype).itemsize)


def _vmem_budget():
    """(working-set budget, vmem_limit_bytes), generation aware with safe clamps."""
    cap = None
    try:
        info = pltpu.get_tpu_info()
        cap = getattr(info, "vmem_capacity_bytes", None)
    except Exception:
        cap = None
    if not cap:
        cap = 64 * 1024 * 1024  # conservative (v7x per-TensorCore VMEM)
    budget = max(14 << 20, min(int(cap * 0.45), 60 << 20))
    limit = max(32 << 20, min(int(cap * 0.75), 100 << 20))
    return budget, limit


def _aligned_divisors(total: int, step: int, cap: int):
    """Divisors of `total` that are multiples of `step`, descending, <= cap."""
    out = []
    c = min(_align_down(total, step), _align_down(cap, step))
    c = max(c, step)
    while c >= step:
        if total % c == 0:
            out.append(c)
        c -= step
    return out or [step]


def _plan(M: int, K: int, N: int, in_dtype, out_dtype):
    in_bytes = jnp.dtype(in_dtype).itemsize
    out_bytes = jnp.dtype(out_dtype).itemsize
    sub = _sublane(in_dtype)
    budget, limit = _vmem_budget()

    Kp = _round_up(K, 128)
    Np = _round_up(N, 128)
    Mp = _round_up(M, sub)          # dtype-aware sublane pad only; never to tm.

    tm_cands = _aligned_divisors(Mp, sub, _TM_CAP)

    # --- Strategy A: full weight resident in VMEM (W fetched from HBM once). ---
    w_vmem = 2 * Np * Kp * in_bytes  # conservatively count both pipeline buffers

    def ws_a(tm):
        return w_vmem + 2 * tm * Kp * in_bytes + 2 * tm * Np * out_bytes

    if ws_a(sub) <= budget:
        tm = next((c for c in tm_cands if ws_a(c) <= budget), sub)
        # Keep >=2 M blocks when cheaply possible so both v7x TensorCores get
        # work on the "parallel" axis (negligible cost on single-TC chips).
        if Mp // tm == 1 and Mp // 2 >= sub and (Mp // 2) % sub == 0:
            tm = Mp // 2
        return dict(strategy="resident", tm=tm, tn=Np, tk=Kp,
                    Mp=Mp, Kp=Kp, Np=Np, limit=limit,
                    in_bytes=in_bytes, out_bytes=out_bytes)

    # --- Strategy B: tile the weight over N (and K only if strips don't fit). ---
    tn_floor = 256 if Np >= 256 else 128
    tn_all = _aligned_divisors(Np, 128, _TN_CAP)
    tn_cands = [c for c in tn_all if c >= tn_floor] or tn_all
    tk_cands = _aligned_divisors(Kp, 128, Kp)

    def ws_b(tm, tn, tk, multi_k):
        w = 2 * (tm * tk + tk * tn) * in_bytes + 2 * tm * tn * out_bytes
        if multi_k:
            w += tm * tn * 4
        return w

    def pick(tk_list, multi_k):
        for tk in tk_list:
            for tm in tm_cands:          # largest tm first: minimizes W re-reads
                for tn in tn_cands:      # then largest tn that still fits
                    if ws_b(tm, tn, tk, multi_k) <= budget:
                        return tm, tn, tk
        return None

    choice = pick([Kp], multi_k=False)   # prefer full-K (no accumulator, no k axis)
    if choice is not None:
        tm, tn, tk = choice
        return dict(strategy="single_k", tm=tm, tn=tn, tk=tk,
                    Mp=Mp, Kp=Kp, Np=Np, limit=limit,
                    in_bytes=in_bytes, out_bytes=out_bytes)

    choice = pick(tk_cands, multi_k=True)
    if choice is None:                   # last resort: minimal aligned tiles
        choice = (sub, tn_cands[-1], tk_cands[-1])
    tm, tn, tk = choice
    return dict(strategy="multi_k", tm=tm, tn=tn, tk=tk,
                Mp=Mp, Kp=Kp, Np=Np, limit=limit,
                in_bytes=in_bytes, out_bytes=out_bytes)


# ---------------------------------------------------------------------------
# Wrapper
# ---------------------------------------------------------------------------

def linear_relu(x2d, w, *, compute_dtype=jnp.bfloat16):
    """relu(x2d @ w.T) via a Pallas TPU kernel.

    x2d: (M, K) activations; w: (N, K) weight in nn.Linear layout.
    compute_dtype: MXU input dtype (default bf16; accumulation stays f32 and
        the output keeps x2d.dtype). Pass jnp.float32 for bit-tight f32.
    """
    M, K = x2d.shape
    N, K2 = w.shape
    assert K == K2, "in_features mismatch"
    out_dtype = x2d.dtype

    cdt = jnp.dtype(compute_dtype) if compute_dtype is not None else jnp.dtype(x2d.dtype)
    if x2d.dtype != cdt:
        x2d = x2d.astype(cdt)
    if w.dtype != cdt:
        w = w.astype(cdt)

    plan = _plan(M, K, N, cdt, out_dtype)
    Mp, Kp, Np = plan["Mp"], plan["Kp"], plan["Np"]
    tm, tn, tk = plan["tm"], plan["tn"], plan["tk"]
    in_bytes, out_bytes = plan["in_bytes"], plan["out_bytes"]
    limit = plan["limit"]

    # Pad: x only to sublane/128 alignment (tiny; K pad is a no-op for 128-mult
    # d_model), weight to lane-aligned (Np, Kp) — cheap, exact under matmul+ReLU.
    if (Mp, Kp) != (M, K):
        x2d = jnp.pad(x2d, ((0, Mp - M), (0, Kp - K)))
    if (Np, Kp) != (N, K):
        w = jnp.pad(w, ((0, Np - N), (0, Kp - K)))

    flops = 2 * Mp * Np * Kp
    if plan["strategy"] == "resident":
        bytes_accessed = (Mp * Kp + Np * Kp) * in_bytes + Mp * Np * out_bytes
    elif plan["strategy"] == "single_k":
        bytes_accessed = (Mp * Kp + (Mp // tm) * Np * Kp) * in_bytes + Mp * Np * out_bytes
    else:
        bytes_accessed = ((Np // tn) * Mp * Kp + (Mp // tm) * Np * Kp) * in_bytes \
                         + Mp * Np * out_bytes
    cost = pl.CostEstimate(flops=flops, transcendentals=0, bytes_accessed=bytes_accessed)

    if plan["strategy"] == "resident":
        # W held resident in VMEM (constant block index); grid over M only.
        out = pl.pallas_call(
            _linear_relu_kernel,
            out_shape=jax.ShapeDtypeStruct((Mp, Np), out_dtype),
            grid_spec=pltpu.PrefetchScalarGridSpec(
                num_scalar_prefetch=0,
                grid=(Mp // tm,),
                in_specs=[
                    pl.BlockSpec((tm, Kp), lambda i: (i, 0)),
                    pl.BlockSpec((Np, Kp), lambda i: (0, 0)),
                ],
                out_specs=pl.BlockSpec((tm, Np), lambda i: (i, 0)),
            ),
            compiler_params=pltpu.CompilerParams(
                dimension_semantics=("parallel",),
                vmem_limit_bytes=limit,
            ),
            cost_estimate=cost,
        )(x2d, w)
    elif plan["strategy"] == "single_k":
        # Full-K strips: x block resident across the j sweep, no accumulator.
        out = pl.pallas_call(
            _linear_relu_kernel,
            out_shape=jax.ShapeDtypeStruct((Mp, Np), out_dtype),
            grid_spec=pltpu.PrefetchScalarGridSpec(
                num_scalar_prefetch=0,
                grid=(Mp // tm, Np // tn),
                in_specs=[
                    pl.BlockSpec((tm, Kp), lambda i, j: (i, 0)),
                    pl.BlockSpec((tn, Kp), lambda i, j: (j, 0)),
                ],
                out_specs=pl.BlockSpec((tm, tn), lambda i, j: (i, j)),
            ),
            compiler_params=pltpu.CompilerParams(
                dimension_semantics=("parallel", "parallel"),
                vmem_limit_bytes=limit,
            ),
            cost_estimate=cost,
        )(x2d, w)
    else:
        # General K-split path with f32 VMEM accumulator.
        out = pl.pallas_call(
            _linear_relu_kernel_ksplit,
            out_shape=jax.ShapeDtypeStruct((Mp, Np), out_dtype),
            grid_spec=pltpu.PrefetchScalarGridSpec(
                num_scalar_prefetch=0,
                grid=(Mp // tm, Np // tn, Kp // tk),
                in_specs=[
                    pl.BlockSpec((tm, tk), lambda i, j, k: (i, k)),
                    pl.BlockSpec((tn, tk), lambda i, j, k: (j, k)),
                ],
                out_specs=pl.BlockSpec((tm, tn), lambda i, j, k: (i, j)),
                scratch_shapes=[pltpu.VMEM((tm, tn), jnp.float32)],
            ),
            compiler_params=pltpu.CompilerParams(
                dimension_semantics=("parallel", "parallel", "arbitrary"),
                vmem_limit_bytes=limit,
            ),
            cost_estimate=cost,
        )(x2d, w)

    if (Mp, Np) != (M, N):
        out = out[:M, :N]
    return out


def basic_model_forward(x, w, *, compute_dtype=jnp.bfloat16):
    """x: (batch, seq, d_model), w: (d_model, d_model) -> relu(x @ w.T)."""
    batch, seq, d_model = x.shape
    x2d = x.reshape(batch * seq, d_model)
    out2d = linear_relu(x2d, w, compute_dtype=compute_dtype)
    return out2d.reshape(batch, seq, d_model)


def reference_forward(x, w):
    return jnp.maximum(jnp.einsum("bsd,nd->bsn", x, w), 0.0)


if __name__ == "__main__":
    d_model = 32
    batch, seq = 2, 8

    key = jax.random.PRNGKey(0)
    k_x, k_w = jax.random.split(key)

    # Deterministic init matching nn.Linear's uniform(-1/sqrt(fan_in), 1/sqrt(fan_in)).
    bound = 1.0 / jnp.sqrt(jnp.float32(d_model))
    w = jax.random.uniform(
        k_w, (d_model, d_model), dtype=jnp.float32, minval=-bound, maxval=bound
    )
    x = jax.random.normal(k_x, (batch, seq, d_model), dtype=jnp.float32)

    ref = reference_forward(x, w)

    # Bit-tight f32 compute path.
    out_f32 = jax.block_until_ready(basic_model_forward(x, w, compute_dtype=jnp.float32))
    assert out_f32.shape == (batch, seq, d_model)
    assert jnp.allclose(out_f32, ref, atol=1e-5, rtol=1e-5)

    # Default path: bf16 MXU inputs, f32 accumulation (MXU-native on v5e/v6e/v7x).
    out_bf16 = jax.block_until_ready(basic_model_forward(x, w))
    assert out_bf16.shape == (batch, seq, d_model)
    ref_bf16 = reference_forward(
        x.astype(jnp.bfloat16).astype(jnp.float32),
        w.astype(jnp.bfloat16).astype(jnp.float32),
    )
    assert jnp.allclose(out_bf16, ref_bf16, atol=1e-3, rtol=1e-3)

    print("KERNEL_OK")
</pallas_src>

<mosaic_0001>
module attributes {stable_mosaic.version = 11 : i64} {
  func.func @_linear_relu_kernel(%arg0: i32, %arg1: memref<8x128xf32, #tpu.memory_space<vmem>>, %arg2: memref<128x128xf32, #tpu.memory_space<vmem>>, %arg3: memref<8x128xf32, #tpu.memory_space<vmem>>) attributes {dimension_semantics = [#tpu.dimension_semantics<parallel>], iteration_bounds = array<i64: 2>, scalar_prefetch = 0 : i64, scratch_operands = 0 : i64, tpu.core_type = #tpu.core_type<tc>, window_params = [{transform_indices = @transform_0, window_bounds = array<i64: 8, 128>}, {pipeline_mode = #tpu.pipeline_mode<synchronous>, transform_indices = @transform_1, window_bounds = array<i64: 128, 128>}, {transform_indices = @transform_2, window_bounds = array<i64: 8, 128>}]} {
    %c0 = arith.constant 0 : index
    %c0_0 = arith.constant 0 : index
    %0 = vector.load %arg1[%c0, %c0_0] : memref<8x128xf32, #tpu.memory_space<vmem>>, vector<8x128xf32>
    %c0_1 = arith.constant 0 : index
    %c0_2 = arith.constant 0 : index
    %1 = vector.load %arg2[%c0_1, %c0_2] : memref<128x128xf32, #tpu.memory_space<vmem>>, vector<128x128xf32>
    %cst = arith.constant dense<0.000000e+00> : vector<8x128xf32>
    %2 = tpu.matmul %0, %1, %cst {dimension_numbers = #tpu.dot_dimension_numbers<[1], [1], [0], [0], [0, 0, 1, 0], [], []>} : vector<8x128xf32>, vector<128x128xf32>, vector<8x128xf32> -> vector<8x128xf32>
    %cst_3 = arith.constant 0.000000e+00 : f32
    %3 = vector.broadcast %cst_3 : f32 to vector<8x128xf32>
    %4 = arith.maximumf %2, %3 : vector<8x128xf32>
    %c0_4 = arith.constant 0 : index
    %c0_5 = arith.constant 0 : index
    %5 = vector.load %arg3[%c0_4, %c0_5] : memref<8x128xf32, #tpu.memory_space<vmem>>, vector<8x128xf32>
    tpu.vector_store %arg3[%c0_4, %c0_5], %4 {strides = array<i32>} : memref<8x128xf32, #tpu.memory_space<vmem>>, vector<8x128xf32>,
    return
  }
  func.func @transform_0(%arg0: i32) -> (i32, i32) {
    %c0_i32 = arith.constant 0 : i32
    %c0_i32_0 = arith.constant 0 : i32
    return %arg0, %c0_i32 : i32, i32
  }
  func.func @transform_1(%arg0: i32) -> (i32, i32) {
    %c0_i32 = arith.constant 0 : i32
    %c0_i32_0 = arith.constant 0 : i32
    %c0_i32_1 = arith.constant 0 : i32
    return %c0_i32, %c0_i32_0 : i32, i32
  }
  func.func @transform_2(%arg0: i32) -> (i32, i32) {
    %c0_i32 = arith.constant 0 : i32
    %c0_i32_0 = arith.constant 0 : i32
    return %arg0, %c0_i32 : i32, i32
  }
}

</mosaic_0001>

<llo_original>
// kernel: tpu_custom_call.1
$region0: #{tpu_custom_call.1}
  #allocation0 [shape = 'u32[]', space=smem, size = 0x4, offset = 0x4, fixed_abs, tag = 'smem constant byte address 0x4 - core index']
  #allocation1 [shape = 'u32[144,128]{1,0:T(1,128)}', space=vmem, size = 0x12000, scoped, tag = 'internal scratch']
  %s0 = inlined_call_operand.hbm [shape: f32[16,128], index: 0, kind: input, shape index: {}]
  %s1 = inlined_call_operand.hbm [shape: f32[128,128], index: 1, kind: input, shape index: {}]
  %s2 = inlined_call_operand.hbm [shape: f32[16,128], index: 2, kind: output, shape index: {}]
  %s3 = sld [smem:[#allocation0]]
  $region49: #{tpu_custom_call.1} parent=0
    _
  %s5 = ssub.s32 1, %s3
  %s6 = scalar_select 0, %s5, %s3
  $region1: #{tpu_custom_call.1} parent=0
    #allocation2 [shape = 'u8[8192]{0}', space=vmem, size = 0x2000, scoped, tag = 'input window, operand 0']
    #allocation3 [shape = 's32[2]{0}', space=sflag, size = 0x8, scoped, tag = 'scoped memory for tpu_custom_call.1']
    #allocation4 [shape = 's32[2]{0}', space=sflag, size = 0x8, scoped, tag = 'scoped memory for tpu_custom_call.1']
    #allocation5 [shape = 'u8[65536]{0}', space=vmem, size = 0x10000, scoped, tag = 'input window, operand 1, single buffered']
    #allocation6 [shape = 's32[1]{0}', space=sflag, size = 0x4, scoped, tag = 'scoped memory for tpu_custom_call.1']
    #allocation7 [shape = 'u8[8192]{0}', space=vmem, size = 0x2000, scoped, tag = 'output window, operand 0']
    %7 = vsyncpa [#allocation3], 0
    %s8 = scalar_lea.sflag [#allocation3], 1
    %9 = vsyncpa %s8, 0
    %10 = vsyncpa [#allocation6], 0
    %11 = vsyncpa [#allocation4], 0
    %s12 = scalar_lea.sflag [#allocation4], 1
    %13 = vsyncpa %s12, 0
    loop: start=0, step=1, limit=4
    $region2: #{tpu_custom_call.1} parent=1 // loop_pre_header
      _
    $region3: #{tpu_custom_call.1} parent=1 // loop_header
      %s15 = sphi 0, %s19
      %p16 = scmp.ge.s32.totalorder %s15, 4
      %s25 = sphi 0, %s27
      %s28 = sphi 0, %s25
      %s29 = sphi 0, %s28
      %s45 = sphi 0, %s29
      %s49 = sphi 0, %s49
      %s51 = sphi 0, %s49
      %s52 = sphi 0, %s51
      %s66 = sphi 0, %s52
      %s72 = sphi 0, %s74
      %s75 = sphi 0, %s72
      %s76 = sphi 0, %s75
      %s92 = sphi 0, %s76
    $region4: #{tpu_custom_call.1} parent=1 // loop_header_branch
      %18 = sbr.rel (%p16) target = $region8
    $region5: #{tpu_custom_call.1} parent=1 // loop_body
      %s20 = ssub.s32 %s15, 1
      %s21 = ssub.s32 %s15, 2
      %s22 = sadd.s32 %s15, 1
      %s23 = ssub.s32 %s15, %s22
      %p24 = scmp.eq.s32.totalorder %s23, 0
      %s26 = sadd.s32 %s25, 1
      %s27 = scalar_select %p24, %s25, %s26
      %p30 = pneg %p24
      %p31 = scmp.eq.s32.totalorder %s15, 1
      %p32 = por %p30, %p31
      %p33 = scmp.ne.s32.totalorder %s25, %s28
      %p34 = scmp.eq.s32.totalorder %s15, 0
      %p35 = por %p33, %p34
      %p36 = scmp.ne.s32.totalorder %s25, %s28
      %p37 = scmp.eq.s32.totalorder %s20, 1
      %p38 = por %p36, %p37
      %p39 = scmp.ne.s32.totalorder %s28, %s29
      %p40 = scmp.eq.s32.totalorder %s20, 0
      %p41 = por %p39, %p40
      %p42 = scmp.ne.s32.totalorder %s28, %s29
      %p43 = scmp.eq.s32.totalorder %s21, 1
      %p44 = por %p42, %p43
      %p46 = scmp.ne.s32.totalorder %s29, %s45
      %p47 = scmp.eq.s32.totalorder %s21, 0
      %p48 = por %p46, %p47
      %s50 = sadd.s32 %s49, 1
      %p53 = scmp.eq.s32.totalorder %s15, 1
      %p54 = scmp.ne.s32.totalorder %s49, %s51
      %p55 = scmp.eq.s32.totalorder %s15, 0
      %p56 = por %p54, %p55
      %p57 = scmp.ne.s32.totalorder %s49, %s51
      %p58 = scmp.eq.s32.totalorder %s20, 1
      %p59 = por %p57, %p58
      %p60 = scmp.ne.s32.totalorder %s51, %s52
      %p61 = scmp.eq.s32.totalorder %s20, 0
      %p62 = por %p60, %p61
      %p63 = scmp.ne.s32.totalorder %s51, %s52
      %p64 = scmp.eq.s32.totalorder %s21, 1
      %p65 = por %p63, %p64
      %p67 = scmp.ne.s32.totalorder %s52, %s66
      %p68 = scmp.eq.s32.totalorder %s21, 0
      %p69 = por %p67, %p68
      %s70 = ssub.s32 %s15, %s22
      %p71 = scmp.eq.s32.totalorder %s70, 0
      %s73 = sadd.s32 %s72, 1
      %s74 = scalar_select %p71, %s72, %s73
      %p77 = pneg %p71
      %p78 = scmp.eq.s32.totalorder %s15, 1
      %p79 = por %p77, %p78
      %p80 = scmp.ne.s32.totalorder %s72, %s75
      %p81 = scmp.eq.s32.totalorder %s15, 0
      %p82 = por %p80, %p81
      %p83 = scmp.ne.s32.totalorder %s72, %s75
      %p84 = scmp.eq.s32.totalorder %s20, 1
      %p85 = por %p83, %p84
      %p86 = scmp.ne.s32.totalorder %s75, %s76
      %p87 = scmp.eq.s32.totalorder %s20, 0
      %p88 = por %p86, %p87
      %p89 = scmp.ne.s32.totalorder %s75, %s76
      %p90 = scmp.eq.s32.totalorder %s21, 1
      %p91 = por %p89, %p90
      %p93 = scmp.ne.s32.totalorder %s76, %s92
      %p94 = scmp.eq.s32.totalorder %s21, 0
      %p95 = por %p93, %p94
      %p96 = scmp.le.s32.totalorder 1, %s15
      %p97 = scmp.lt.s32.totalorder %s15, 3
      %p98 = pnand %p96, %p97
      %p99 = pneg %p98
      // Predicated region
      $region9: #{tpu_custom_call.1} parent=5 // pred_check
        _
      $region10: #{tpu_custom_call.1} parent=5 // pred_check_branch
        %101 = sbr.rel (%p98) target = $region12
      $region11: #{tpu_custom_call.1} parent=5 // pred_region
        %s102 = ssub.s32 %s15, 1
        // Predicated region
        $region13: #{tpu_custom_call.1} parent=11 // pred_check
          %p103 = pneg %p62
        $region14: #{tpu_custom_call.1} parent=11 // pred_check_branch
          %105 = sbr.rel (%p103) target = $region16
        $region15: #{tpu_custom_call.1} parent=11 // pred_region
          %s107 = ssub.s32 2048, 2048
          %108 = vsyncadd [#allocation6], %s107
          %s109 = sshll.u32 [#allocation5], 4
          %s110 = int_to_ptr.vmem [resolvable:$true] %s109
          %115 = dma.hbm_to_vmem [thread:$0]  %s1, 2048, %s110, [#allocation6], 128, 128, 8
        $region16: #{tpu_custom_call.1} parent=11 // pred_fallthru
          _
      $region12: #{tpu_custom_call.1} parent=5 // pred_fallthru
        _
      %p116 = scmp.lt.s32.totalorder %s15, 2
      // Predicated region
      $region17: #{tpu_custom_call.1} parent=5 // pred_check
        %p117 = pneg %p116
      $region18: #{tpu_custom_call.1} parent=5 // pred_check_branch
        %119 = sbr.rel (%p117) target = $region20
      $region19: #{tpu_custom_call.1} parent=5 // pred_region
        // Predicated region
        $region21: #{tpu_custom_call.1} parent=19 // pred_check
          %p120 = pneg %p35
        $region22: #{tpu_custom_call.1} parent=19 // pred_check_branch
          %122 = sbr.rel (%p120) target = $region24
        $region23: #{tpu_custom_call.1} parent=19 // pred_region
          %s123 = sand.u32 %s25, 1
          %s124 = scalar_lea.sflag [#allocation3], %s123
          %s125 = sand.u32 %s25, 1
          %s126 = smul.addr %s125, 8
          %s127 = scalar_lea.vmem [#allocation2], %s126
          %s129 = ssub.s32 128, 128
          %130 = vsyncadd %s124, %s129
          %s131 = smul.addr %s15, 128
          %s132 = scalar_lea.hbm %s0, %s131
          %s134 = sshll.u32 %s127, 4
          %s135 = int_to_ptr.vmem [resolvable:$true] %s134
          %137 = dma.hbm_to_vmem [thread:$0]  %s132, 128, %s135, %s124
        $region24: #{tpu_custom_call.1} parent=19 // pred_fallthru
          _
      $region20: #{tpu_custom_call.1} parent=5 // pred_fallthru
        _
      %p138 = scmp.le.s32.totalorder 1, %s15
      %p139 = scmp.lt.s32.totalorder %s15, 3
      %p140 = pnand %p138, %p139
      %p141 = pneg %p140
      // Predicated region
      $region25: #{tpu_custom_call.1} parent=5 // pred_check
        _
      $region26: #{tpu_custom_call.1} parent=5 // pred_check_branch
        %143 = sbr.rel (%p140) target = $region28
      $region27: #{tpu_custom_call.1} parent=5 // pred_region
        %s144 = ssub.s32 %s15, 1
        %s145 = sand.u32 %s28, 1
        %s146 = scalar_lea.sflag [#allocation3], %s145
        %s147 = sand.u32 %s28, 1
        %s148 = smul.addr %s147, 8
        %s149 = scalar_lea.vmem [#allocation2], %s148
        // Predicated region
        $region29: #{tpu_custom_call.1} parent=27 // pred_check
          %p150 = pneg %p41
        $region30: #{tpu_custom_call.1} parent=27 // pred_check_branch
          %152 = sbr.rel (%p150) target = $region32
        $region31: #{tpu_custom_call.1} parent=27 // pred_region
          %153 = dma.done %s146, 128
        $region32: #{tpu_custom_call.1} parent=27 // pred_fallthru
          _
        // Predicated region
        $region33: #{tpu_custom_call.1} parent=27 // pred_check
          %p154 = pneg %p62
        $region34: #{tpu_custom_call.1} parent=27 // pred_check_branch
          %156 = sbr.rel (%p154) target = $region36
        $region35: #{tpu_custom_call.1} parent=27 // pred_region
          %157 = dma.done [#allocation6], 2048
        $region36: #{tpu_custom_call.1} parent=27 // pred_fallthru
          _
        %s158 = sand.u32 %s28, 1
        %s159 = scalar_lea.sflag [#allocation3], %s158
        %s160 = sand.u32 %s28, 1
        %s161 = smul.addr %s160, 8
        %s162 = scalar_lea.vmem [#allocation2], %s161
        %p163 = pneg %p41
        %p164 = pneg %p38
        %p165 = pneg %p62
        %p166 = pneg %p59
        %p167 = pneg %p88
        %p168 = pneg %p85
        %s169 = sand.u32 %s75, 1
        %s170 = scalar_lea.sflag [#allocation4], %s169
        %s171 = sand.u32 %s75, 1
        %s172 = smul.addr %s171, 8
        %s173 = scalar_lea.vmem [#allocation7], %s172
        %v174 = vld [vmem:[%s149] sm:$0xff]
        %v175 = vld [vmem:[#allocation5] sm:$0xff]
        %v176 = vld [vmem:[#allocation5 + $0x8] sm:$0xff]
        %v177 = vld [vmem:[#allocation5 + $0x10] sm:$0xff]
        %v178 = vld [vmem:[#allocation5 + $0x18] sm:$0xff]
        %v179 = vld [vmem:[#allocation5 + $0x20] sm:$0xff]
        %v180 = vld [vmem:[#allocation5 + $0x28] sm:$0xff]
        %v181 = vld [vmem:[#allocation5 + $0x30] sm:$0xff]
        %v182 = vld [vmem:[#allocation5 + $0x38] sm:$0xff]
        %v183 = vld [vmem:[#allocation5 + $0x40] sm:$0xff]
        %v184 = vld [vmem:[#allocation5 + $0x48] sm:$0xff]
        %v185 = vld [vmem:[#allocation5 + $0x50] sm:$0xff]
        %v186 = vld [vmem:[#allocation5 + $0x58] sm:$0xff]
        %v187 = vld [vmem:[#allocation5 + $0x60] sm:$0xff]
        %v188 = vld [vmem:[#allocation5 + $0x68] sm:$0xff]
        %v189 = vld [vmem:[#allocation5 + $0x70] sm:$0xff]
        %v190 = vld [vmem:[#allocation5 + $0x78] sm:$0xff]
        %191 = vmatprep.subr.mxu0 0.0
        %192 = vmatpush1.xpose.msra.mxu0 %v175
        %193 = vmatprep.subr.mxu0 0.0
        %194 = vmatpush1.xpose.msra.mxu0 %v176
        %195 = vmatprep.subr.mxu0 0.0
        %196 = vmatpush1.xpose.msra.mxu0 %v177
        %197 = vmatprep.subr.mxu0 0.0
        %198 = vmatpush1.xpose.msra.mxu0 %v178
        %199 = vmatprep.subr.mxu0 0.0
        %200 = vmatpush1.xpose.msra.mxu0 %v179
        %201 = vmatprep.subr.mxu0 0.0
        %202 = vmatpush1.xpose.msra.mxu0 %v180
        %203 = vmatprep.subr.mxu0 0.0
        %204 = vmatpush1.xpose.msra.mxu0 %v181
        %205 = vmatprep.subr.mxu0 0.0
        %206 = vmatpush1.xpose.msra.mxu0 %v182
        %207 = vmatprep.subr.mxu0 0.0
        %208 = vmatpush1.xpose.msra.mxu0 %v183
        %209 = vmatprep.subr.mxu0 0.0
        %210 = vmatpush1.xpose.msra.mxu0 %v184
        %211 = vmatprep.subr.mxu0 0.0
        %212 = vmatpush1.xpose.msra.mxu0 %v185
        %213 = vmatprep.subr.mxu0 0.0
        %214 = vmatpush1.xpose.msra.mxu0 %v186
        %215 = vmatprep.subr.mxu0 0.0
        %216 = vmatpush1.xpose.msra.mxu0 %v187
        %217 = vmatprep.subr.mxu0 0.0
        %218 = vmatpush1.xpose.msra.mxu0 %v188
        %219 = vmatprep.subr.mxu0 0.0
        %220 = vmatpush1.xpose.msra.mxu0 %v189
        %221 = vmatprep.subr.mxu0 0.0
        %222 = vmatpush1.xpose.msra.mxu0 %v190
        %223 = vmatprep.subr.mxu0 0.0
        %224 = vmatpush1.xpose.msra.mxu0 0.0
        %225 = vmatprep.subr.mxu0 0.0
        %226 = vmatpush1.xpose.msra.mxu0 0.0
        %227 = vmatprep.subr.mxu0 0.0
        %228 = vmatpush1.xpose.msra.mxu0 0.0
        %229 = vmatprep.subr.mxu0 0.0
        %230 = vmatpush1.xpose.msra.mxu0 0.0
        %231 = vmatprep.subr.mxu0 0.0
        %232 = vmatpush1.xpose.msra.mxu0 0.0
        %233 = vmatprep.subr.mxu0 0.0
        %234 = vmatpush1.xpose.msra.mxu0 0.0
        %235 = vmatprep.subr.mxu0 0.0
        %236 = vmatpush1.xpose.msra.mxu0 0.0
        %237 = vmatprep.subr.mxu0 0.0
        %238 = vmatpush1.xpose.msra.mxu0 0.0
        %239 = vmatprep.subr.mxu0 0.0
        %240 = vmatpush1.xpose.msra.mxu0 0.0
        %241 = vmatprep.subr.mxu0 0.0
        %242 = vmatpush1.xpose.msra.mxu0 0.0
        %243 = vmatprep.subr.mxu0 0.0
        %244 = vmatpush1.xpose.msra.mxu0 0.0
        %245 = vmatprep.subr.mxu0 0.0
        %246 = vmatpush1.xpose.msra.mxu0 0.0
        %247 = vmatprep.subr.mxu0 0.0
        %248 = vmatpush1.xpose.msra.mxu0 0.0
        %249 = vmatprep.subr.mxu0 0.0
        %250 = vmatpush1.xpose.msra.mxu0 0.0
        %251 = vmatprep.subr.mxu0 0.0
        %252 = vmatpush1.xpose.msra.mxu0 0.0
        %253 = vmatprep.subr.mxu0 0.0
        %254 = vmatpush1.xpose.msra.mxu0 0.0
        %255 = vmatprep.mubr.f32.mxu0 0.0
        %256 = vmatmul.mubr.f32.gmra.mrb[0].mxu0 %v174
        %v257 = vpop.f32.mrb[0].mxu0
        %v258 = vadd.f32 0.0, %v257
        %v259 = vpop.f32.mrb[0].mxu0
        %260 = vdwg.mxu0
        %v261 = vmax.f32 %v258, 0.0
        %262 = vst [vmem:[%s173] sm:$0xff] %v261
        %s263 = sand.u32 %s75, 1
        %s264 = scalar_lea.sflag [#allocation4], %s263
        %s265 = sand.u32 %s75, 1
        %s266 = smul.addr %s265, 8
        %s267 = scalar_lea.vmem [#allocation7], %s266
        // Predicated region
        $region37: #{tpu_custom_call.1} parent=27 // pred_check
          %p268 = pneg %p85
        $region38: #{tpu_custom_call.1} parent=27 // pred_check_branch
          %270 = sbr.rel (%p268) target = $region40
        $region39: #{tpu_custom_call.1} parent=27 // pred_region
          %s272 = ssub.s32 128, 128
          %273 = vsyncadd %s264, %s272
          %s274 = smul.addr %s20, 128
          %s275 = scalar_lea.hbm %s2, %s274
          %s277 = sshll.u32 %s267, 4
          %s278 = int_to_ptr.vmem [resolvable:$true] %s277
          %280 = dma.vmem_to_hbm [thread:$0]  %s278, 128, %s275, %s264
        $region40: #{tpu_custom_call.1} parent=27 // pred_fallthru
          _
      $region28: #{tpu_custom_call.1} parent=5 // pred_fallthru
        _
      %p281 = scmp.le.s32.totalorder 2, %s15
      // Predicated region
      $region41: #{tpu_custom_call.1} parent=5 // pred_check
        %p282 = pneg %p281
      $region42: #{tpu_custom_call.1} parent=5 // pred_check_branch
        %284 = sbr.rel (%p282) target = $region44
      $region43: #{tpu_custom_call.1} parent=5 // pred_region
        %s285 = ssub.s32 %s15, 2
        // Predicated region
        $region45: #{tpu_custom_call.1} parent=43 // pred_check
          %p286 = pneg %p91
        $region46: #{tpu_custom_call.1} parent=43 // pred_check_branch
          %288 = sbr.rel (%p286) target = $region48
        $region47: #{tpu_custom_call.1} parent=43 // pred_region
          %s289 = sand.u32 %s76, 1
          %s290 = scalar_lea.sflag [#allocation4], %s289
          %s291 = sand.u32 %s76, 1
          %s292 = smul.addr %s291, 8
          %s293 = scalar_lea.vmem [#allocation7], %s292
          %294 = dma.done %s290, 128
        $region48: #{tpu_custom_call.1} parent=43 // pred_fallthru
          _
      $region44: #{tpu_custom_call.1} parent=5 // pred_fallthru
        _
    $region6: #{tpu_custom_call.1} parent=1 // loop_footer
      %s19 = sadd.s32 1, %s15
    $region7: #{tpu_custom_call.1} parent=1 // loop_footer_branch
      %14 = sbr.rel target = $region3
    $region8: #{tpu_custom_call.1} parent=1 // loop_exit
      _
    %295 = vsyncpa [#allocation3], 1
    %s296 = scalar_lea.sflag [#allocation3], 1
    %297 = vsyncpa %s296, 1
    %298 = vsyncpa [#allocation6], 1
    %299 = vsyncpa [#allocation4], 1
    %s300 = scalar_lea.sflag [#allocation4], 1
    %301 = vsyncpa %s300, 1

</llo_original>
